<compile_context>
chip_gen: v7x
topology: tpu7x:2x2x1
jax: 0.10.0
libtpu: 0.0.40
codegen_flags: <defaults>
</compile_context>

<pallas_src>
import functools
import math

import jax
import jax.numpy as jnp
import numpy as np
from jax import lax
from jax.experimental import pallas as pl
from jax.experimental.pallas import tpu as pltpu


# ----------------------------------------------------------------------------
# Fused double-conv kernel
# ----------------------------------------------------------------------------
def _double_conv_kernel(x_ref, w1_ref, b1_ref, w2_ref, b2_ref, o_ref,
                        xe1_ref, col1_ref, xe2_ref, col2_ref, *, H, W, P):
    # x_ref : (1, Cin, N)      flattened NCHW image, N = H*W on the lane axis
    # w1_ref: (Cout, 9*Cin)    conv1 weight (BN1 folded), taps ordered (dy,dx,ci)
    # b1_ref: (Cout, 1)        folded BN1 bias
    # w2_ref: (Cout, 9*Cout)   conv2 weight (BN2 folded)
    # b2_ref: (Cout, 1)        folded BN2 bias
    # o_ref : (1, Cout, N)     lane-dense output
    # xe*_ref: (C, P + N + W + 1)  zero-extended flat buffers (P-aligned pad)
    # col*_ref: (9*C, N)           im2col matrices
    N = H * W

    # Column-validity masks for the horizontal taps (shared by both convs).
    # Vertical out-of-bounds taps read the zero extension of the flat buffer,
    # so they need no mask.
    wpos = lax.broadcasted_iota(jnp.int32, (1, N), 1) % W
    left_ok = wpos >= 1           # dx == 0 reads column w-1
    right_ok = wpos <= W - 2      # dx == 2 reads column w+1

    def conv3x3_bn_relu(xe_ref, col_ref, src, w_ref, b_ref):
        c = xe_ref.shape[0]
        ne = xe_ref.shape[1]
        # Zero only the pad regions the shifted taps can read; the payload
        # region [P, P+N) is fully overwritten by `src` below.
        xe_ref[:, :P] = jnp.zeros((c, P), xe_ref.dtype)
        xe_ref[:, P + N:] = jnp.zeros((c, ne - P - N), xe_ref.dtype)
        xe_ref[:, P:P + N] = src

        # Row block t = 3*dy + dx of `col` holds the input shifted by
        # (dy-1, dx-1) with zero padding (pad=1), flattened over H*W.
        for dy in range(3):
            for dx in range(3):
                t = 3 * dy + dx
                s = P + (dy - 1) * W + (dx - 1)
                v = xe_ref[:, s:s + N]
                if dx == 0:
                    v = jnp.where(left_ok, v, 0.0)
                elif dx == 2:
                    v = jnp.where(right_ok, v, 0.0)
                col_ref[t * c:(t + 1) * c, :] = v

        acc = jnp.dot(w_ref[...], col_ref[...],
                      preferred_element_type=jnp.float32)
        return jnp.maximum(acc + b_ref[...], 0.0)        # (Cout, N)

    # conv1 (3x3, pad 1, no bias) + folded BN1 + ReLU
    h = conv3x3_bn_relu(xe1_ref, col1_ref, x_ref[0], w1_ref, b1_ref)
    # conv2 (3x3, pad 1, no bias) + folded BN2 + ReLU  -> lane-dense store
    o_ref[0] = conv3x3_bn_relu(xe2_ref, col2_ref, h, w2_ref, b2_ref)


# ----------------------------------------------------------------------------
# Host-side helpers
# ----------------------------------------------------------------------------
def _fold_bn(w_oihw, gamma, beta, mean, var, eps=1e-5):
    """Fold an eval-mode BatchNorm2d into the preceding bias-free 3x3 conv."""
    scale = gamma / jnp.sqrt(var + eps)
    cout, cin = w_oihw.shape[0], w_oihw.shape[1]
    w = w_oihw * scale[:, None, None, None]
    # (co, ci, dy, dx) -> (co, dy, dx, ci) -> (co, 9*ci): matches im2col order.
    w_flat = jnp.transpose(w, (0, 2, 3, 1)).reshape(cout, 9 * cin)
    b = (beta - mean * scale).reshape(cout, 1)
    return w_flat, b


def double_conv_forward(x, params):
    B, Cin, H, W = x.shape
    Cout = params['conv1_w'].shape[0]
    N = H * W
    P = pl.cdiv(W + 1, 128) * 128       # lane-aligned left zero-extension (>= W+1)
    NE = P + N + W + 1                  # zero-extended flattened length

    w1f, b1f = _fold_bn(params['conv1_w'], params['bn1_gamma'], params['bn1_beta'],
                        params['bn1_mean'], params['bn1_var'])
    w2f, b2f = _fold_bn(params['conv2_w'], params['bn2_gamma'], params['bn2_beta'],
                        params['bn2_mean'], params['bn2_var'])

    x_flat = x.reshape(B, Cin, N)       # free reshape of contiguous NCHW

    out_flat = pl.pallas_call(
        functools.partial(_double_conv_kernel, H=H, W=W, P=P),
        out_shape=jax.ShapeDtypeStruct((B, Cout, N), jnp.float32),
        grid=(B,),
        in_specs=[
            pl.BlockSpec((1, Cin, N), lambda b: (b, 0, 0)),
            # Weights/biases: constant block index -> fetched once, not re-DMA'd
            # per batch step.
            pl.BlockSpec((Cout, 9 * Cin), lambda b: (0, 0)),
            pl.BlockSpec((Cout, 1), lambda b: (0, 0)),
            pl.BlockSpec((Cout, 9 * Cout), lambda b: (0, 0)),
            pl.BlockSpec((Cout, 1), lambda b: (0, 0)),
        ],
        out_specs=pl.BlockSpec((1, Cout, N), lambda b: (b, 0, 0)),
        scratch_shapes=[
            pltpu.VMEM((Cin, NE), jnp.float32),        # zero-extended input
            pltpu.VMEM((9 * Cin, N), jnp.float32),     # im2col for conv1
            pltpu.VMEM((Cout, NE), jnp.float32),       # zero-extended hidden
            pltpu.VMEM((9 * Cout, N), jnp.float32),    # im2col for conv2
        ],
        compiler_params=pltpu.CompilerParams(dimension_semantics=("parallel",)),
    )(x_flat, w1f, b1f, w2f, b2f)
    return out_flat.reshape(B, Cout, H, W)


# ----------------------------------------------------------------------------
# Parameters (deterministic synthetic init, mirroring the module's shapes)
# ----------------------------------------------------------------------------
def init_params(key, in_channels, out_channels):
    ks = jax.random.split(key, 10)

    def conv_init(k, cout, cin):
        s = 1.0 / math.sqrt(cin * 9)
        return jax.random.uniform(k, (cout, cin, 3, 3), jnp.float32, -s, s)

    return dict(
        conv1_w=conv_init(ks[0], out_channels, in_channels),
        bn1_gamma=jax.random.uniform(ks[1], (out_channels,), jnp.float32, 0.5, 1.5),
        bn1_beta=jax.random.uniform(ks[2], (out_channels,), jnp.float32, -0.5, 0.5),
        bn1_mean=0.1 * jax.random.normal(ks[3], (out_channels,), jnp.float32),
        bn1_var=jax.random.uniform(ks[4], (out_channels,), jnp.float32, 0.5, 1.5),
        conv2_w=conv_init(ks[5], out_channels, out_channels),
        bn2_gamma=jax.random.uniform(ks[6], (out_channels,), jnp.float32, 0.5, 1.5),
        bn2_beta=jax.random.uniform(ks[7], (out_channels,), jnp.float32, -0.5, 0.5),
        bn2_mean=0.1 * jax.random.normal(ks[8], (out_channels,), jnp.float32),
        bn2_var=jax.random.uniform(ks[9], (out_channels,), jnp.float32, 0.5, 1.5),
    )


# ----------------------------------------------------------------------------
# Pure-JAX reference (correctness check only)
# ----------------------------------------------------------------------------
def reference_forward(x, p, eps=1e-5):
    def block(inp, w, gamma, beta, mean, var):
        y = lax.conv_general_dilated(
            inp, w, window_strides=(1, 1), padding=[(1, 1), (1, 1)],
            dimension_numbers=('NCHW', 'OIHW', 'NCHW'))
        y = (y - mean[None, :, None, None]) * (
            gamma[None, :, None, None] / jnp.sqrt(var[None, :, None, None] + eps))
        y = y + beta[None, :, None, None]
        return jnp.maximum(y, 0.0)

    h = block(x, p['conv1_w'], p['bn1_gamma'], p['bn1_beta'],
              p['bn1_mean'], p['bn1_var'])
    return block(h, p['conv2_w'], p['bn2_gamma'], p['bn2_beta'],
                 p['bn2_mean'], p['bn2_var'])


if __name__ == "__main__":
    B, Cin, Cout, H, W = 2, 4, 8, 16, 16
    key = jax.random.PRNGKey(0)
    kx, kp = jax.random.split(key)
    x = jax.random.normal(kx, (B, Cin, H, W), jnp.float32)
    params = init_params(kp, Cin, Cout)

    out = jax.jit(double_conv_forward)(x, params)
    out = jax.block_until_ready(out)

    ref = reference_forward(x, params)
    assert out.shape == (B, Cout, H, W)
    np.testing.assert_allclose(np.asarray(out), np.asarray(ref),
                               rtol=1e-4, atol=1e-4)
    print("KERNEL_OK")
</pallas_src>

<mosaic_0001>
module attributes {stable_mosaic.version = 11 : i64} {
  func.func @_double_conv_kernel(%arg0: i32, %arg1: memref<1x4x256xf32, #tpu.memory_space<vmem>>, %arg2: memref<8x36xf32, #tpu.memory_space<vmem>>, %arg3: memref<8x1xf32, #tpu.memory_space<vmem>>, %arg4: memref<8x72xf32, #tpu.memory_space<vmem>>, %arg5: memref<8x1xf32, #tpu.memory_space<vmem>>, %arg6: memref<1x8x256xf32, #tpu.memory_space<vmem>>, %arg7: memref<4x401xf32, #tpu.memory_space<vmem>>, %arg8: memref<36x256xf32, #tpu.memory_space<vmem>>, %arg9: memref<8x401xf32, #tpu.memory_space<vmem>>, %arg10: memref<72x256xf32, #tpu.memory_space<vmem>>) attributes {dimension_semantics = [#tpu.dimension_semantics<parallel>], iteration_bounds = array<i64: 2>, scalar_prefetch = 0 : i64, scratch_operands = 4 : i64, tpu.core_type = #tpu.core_type<tc>, window_params = [{transform_indices = @transform_0, window_bounds = array<i64: 1, 4, 256>}, {pipeline_mode = #tpu.pipeline_mode<synchronous>, transform_indices = @transform_1, window_bounds = array<i64: 8, 36>}, {pipeline_mode = #tpu.pipeline_mode<synchronous>, transform_indices = @transform_2, window_bounds = array<i64: 8, 1>}, {pipeline_mode = #tpu.pipeline_mode<synchronous>, transform_indices = @transform_3, window_bounds = array<i64: 8, 72>}, {pipeline_mode = #tpu.pipeline_mode<synchronous>, transform_indices = @transform_4, window_bounds = array<i64: 8, 1>}, {transform_indices = @transform_5, window_bounds = array<i64: 1, 8, 256>}]} {
    %0 = tpu.iota {dimensions = array<i32: 1>} : vector<1x256xi32>
    %c16_i32 = arith.constant 16 : i32
    %c0_i32 = arith.constant 0 : i32
    %1 = arith.cmpi eq, %c16_i32, %c0_i32 : i32
    %c1_i32 = arith.constant 1 : i32
    %2 = arith.select %1, %c1_i32, %c16_i32 : i32
    %3 = vector.broadcast %2 : i32 to vector<1x256xi32>
    %4 = arith.remsi %0, %3 : vector<1x256xi32>
    %c0_i32_0 = arith.constant 0 : i32
    %5 = vector.broadcast %c0_i32_0 : i32 to vector<1x256xi32>
    %6 = arith.cmpi ne, %4, %5 : vector<1x256xi32>
    %c0_i32_1 = arith.constant 0 : i32
    %7 = vector.broadcast %c0_i32_1 : i32 to vector<1x256xi32>
    %8 = arith.cmpi slt, %4, %7 : vector<1x256xi32>
    %c0_i32_2 = arith.constant 0 : i32
    %9 = arith.cmpi slt, %2, %c0_i32_2 : i32
    %10 = vector.broadcast %9 : i1 to vector<1x256xi1>
    %11 = vector.broadcast %10 : vector<1x256xi1> to vector<1x256xi1>
    %12 = arith.xori %8, %11 : vector<1x256xi1>
    %13 = arith.andi %12, %6 : vector<1x256xi1>
    %14 = vector.broadcast %2 : i32 to vector<1x256xi32>
    %15 = arith.addi %4, %14 : vector<1x256xi32>
    %16 = arith.select %13, %15, %4 : vector<1x256xi1>, vector<1x256xi32>
    %c1_i32_3 = arith.constant 1 : i32
    %17 = vector.broadcast %c1_i32_3 : i32 to vector<1x256xi32>
    %18 = arith.cmpi sge, %16, %17 : vector<1x256xi32>
    %c14_i32 = arith.constant 14 : i32
    %19 = vector.broadcast %c14_i32 : i32 to vector<1x256xi32>
    %20 = arith.cmpi sle, %16, %19 : vector<1x256xi32>
    %c0 = arith.constant 0 : index
    %c0_4 = arith.constant 0 : index
    %c0_5 = arith.constant 0 : index
    %21 = vector.load %arg1[%c0, %c0_4, %c0_5] : memref<1x4x256xf32, #tpu.memory_space<vmem>>, vector<1x4x256xf32>
    %22 = vector.shape_cast %21 : vector<1x4x256xf32> to vector<4x256xf32>
    %cst = arith.constant 0.000000e+00 : f32
    %23 = vector.broadcast %cst : f32 to vector<4x128xf32>
    %c0_6 = arith.constant 0 : index
    %c0_7 = arith.constant 0 : index
    %24 = vector.load %arg7[%c0_6, %c0_7] : memref<4x401xf32, #tpu.memory_space<vmem>>, vector<4x128xf32>
    tpu.vector_store %arg7[%c0_6, %c0_7], %23 {strides = array<i32>} : memref<4x401xf32, #tpu.memory_space<vmem>>, vector<4x128xf32>,
    %cst_8 = arith.constant 0.000000e+00 : f32
    %25 = vector.broadcast %cst_8 : f32 to vector<4x17xf32>
    %c0_9 = arith.constant 0 : index
    %c384 = arith.constant 384 : index
    %26 = vector.load %arg7[%c0_9, %c384] : memref<4x401xf32, #tpu.memory_space<vmem>>, vector<4x17xf32>
    tpu.vector_store %arg7[%c0_9, %c384], %25 {strides = array<i32>} : memref<4x401xf32, #tpu.memory_space<vmem>>, vector<4x17xf32>,
    %c0_10 = arith.constant 0 : index
    %c128 = arith.constant 128 : index
    %27 = vector.load %arg7[%c0_10, %c128] : memref<4x401xf32, #tpu.memory_space<vmem>>, vector<4x256xf32>
    tpu.vector_store %arg7[%c0_10, %c128], %22 {strides = array<i32>} : memref<4x401xf32, #tpu.memory_space<vmem>>, vector<4x256xf32>,
    %c0_11 = arith.constant 0 : index
    %c111 = arith.constant 111 : index
    %28 = vector.load %arg7[%c0_11, %c111] : memref<4x401xf32, #tpu.memory_space<vmem>>, vector<4x256xf32>
    %cst_12 = arith.constant 0.000000e+00 : f32
    %29 = vector.shape_cast %18 : vector<1x256xi1> to vector<1x256xi1>
    %30 = vector.broadcast %29 : vector<1x256xi1> to vector<4x256xi1>
    %31 = vector.broadcast %cst_12 : f32 to vector<4x256xf32>
    %32 = arith.select %30, %28, %31 : vector<4x256xi1>, vector<4x256xf32>
    %c0_13 = arith.constant 0 : index
    %c0_14 = arith.constant 0 : index
    %33 = vector.load %arg8[%c0_13, %c0_14] : memref<36x256xf32, #tpu.memory_space<vmem>>, vector<4x256xf32>
    tpu.vector_store %arg8[%c0_13, %c0_14], %32 {strides = array<i32>} : memref<36x256xf32, #tpu.memory_space<vmem>>, vector<4x256xf32>,
    %c0_15 = arith.constant 0 : index
    %c112 = arith.constant 112 : index
    %34 = vector.load %arg7[%c0_15, %c112] : memref<4x401xf32, #tpu.memory_space<vmem>>, vector<4x256xf32>
    %c4 = arith.constant 4 : index
    %c0_16 = arith.constant 0 : index
    %35 = vector.load %arg8[%c4, %c0_16] : memref<36x256xf32, #tpu.memory_space<vmem>>, vector<4x256xf32>
    tpu.vector_store %arg8[%c4, %c0_16], %34 {strides = array<i32>} : memref<36x256xf32, #tpu.memory_space<vmem>>, vector<4x256xf32>,
    %c0_17 = arith.constant 0 : index
    %c113 = arith.constant 113 : index
    %36 = vector.load %arg7[%c0_17, %c113] : memref<4x401xf32, #tpu.memory_space<vmem>>, vector<4x256xf32>
    %cst_18 = arith.constant 0.000000e+00 : f32
    %37 = vector.shape_cast %20 : vector<1x256xi1> to vector<1x256xi1>
    %38 = vector.broadcast %37 : vector<1x256xi1> to vector<4x256xi1>
    %39 = vector.broadcast %cst_18 : f32 to vector<4x256xf32>
    %40 = arith.select %38, %36, %39 : vector<4x256xi1>, vector<4x256xf32>
    %c8 = arith.constant 8 : index
    %c0_19 = arith.constant 0 : index
    %41 = vector.load %arg8[%c8, %c0_19] : memref<36x256xf32, #tpu.memory_space<vmem>>, vector<4x256xf32>
    tpu.vector_store %arg8[%c8, %c0_19], %40 {strides = array<i32>} : memref<36x256xf32, #tpu.memory_space<vmem>>, vector<4x256xf32>,
    %c0_20 = arith.constant 0 : index
    %c127 = arith.constant 127 : index
    %42 = vector.load %arg7[%c0_20, %c127] : memref<4x401xf32, #tpu.memory_space<vmem>>, vector<4x256xf32>
    %cst_21 = arith.constant 0.000000e+00 : f32
    %43 = vector.shape_cast %18 : vector<1x256xi1> to vector<1x256xi1>
    %44 = vector.broadcast %43 : vector<1x256xi1> to vector<4x256xi1>
    %45 = vector.broadcast %cst_21 : f32 to vector<4x256xf32>
    %46 = arith.select %44, %42, %45 : vector<4x256xi1>, vector<4x256xf32>
    %c12 = arith.constant 12 : index
    %c0_22 = arith.constant 0 : index
    %47 = vector.load %arg8[%c12, %c0_22] : memref<36x256xf32, #tpu.memory_space<vmem>>, vector<4x256xf32>
    tpu.vector_store %arg8[%c12, %c0_22], %46 {strides = array<i32>} : memref<36x256xf32, #tpu.memory_space<vmem>>, vector<4x256xf32>,
    %c0_23 = arith.constant 0 : index
    %c128_24 = arith.constant 128 : index
    %48 = vector.load %arg7[%c0_23, %c128_24] : memref<4x401xf32, #tpu.memory_space<vmem>>, vector<4x256xf32>
    %c16 = arith.constant 16 : index
    %c0_25 = arith.constant 0 : index
    %49 = vector.load %arg8[%c16, %c0_25] : memref<36x256xf32, #tpu.memory_space<vmem>>, vector<4x256xf32>
    tpu.vector_store %arg8[%c16, %c0_25], %48 {strides = array<i32>} : memref<36x256xf32, #tpu.memory_space<vmem>>, vector<4x256xf32>,
    %c0_26 = arith.constant 0 : index
    %c129 = arith.constant 129 : index
    %50 = vector.load %arg7[%c0_26, %c129] : memref<4x401xf32, #tpu.memory_space<vmem>>, vector<4x256xf32>
    %cst_27 = arith.constant 0.000000e+00 : f32
    %51 = vector.shape_cast %20 : vector<1x256xi1> to vector<1x256xi1>
    %52 = vector.broadcast %51 : vector<1x256xi1> to vector<4x256xi1>
    %53 = vector.broadcast %cst_27 : f32 to vector<4x256xf32>
    %54 = arith.select %52, %50, %53 : vector<4x256xi1>, vector<4x256xf32>
    %c20 = arith.constant 20 : index
    %c0_28 = arith.constant 0 : index
    %55 = vector.load %arg8[%c20, %c0_28] : memref<36x256xf32, #tpu.memory_space<vmem>>, vector<4x256xf32>
    tpu.vector_store %arg8[%c20, %c0_28], %54 {strides = array<i32>} : memref<36x256xf32, #tpu.memory_space<vmem>>, vector<4x256xf32>,
    %c0_29 = arith.constant 0 : index
    %c143 = arith.constant 143 : index
    %56 = vector.load %arg7[%c0_29, %c143] : memref<4x401xf32, #tpu.memory_space<vmem>>, vector<4x256xf32>
    %cst_30 = arith.constant 0.000000e+00 : f32
    %57 = vector.shape_cast %18 : vector<1x256xi1> to vector<1x256xi1>
    %58 = vector.broadcast %57 : vector<1x256xi1> to vector<4x256xi1>
    %59 = vector.broadcast %cst_30 : f32 to vector<4x256xf32>
    %60 = arith.select %58, %56, %59 : vector<4x256xi1>, vector<4x256xf32>
    %c24 = arith.constant 24 : index
    %c0_31 = arith.constant 0 : index
    %61 = vector.load %arg8[%c24, %c0_31] : memref<36x256xf32, #tpu.memory_space<vmem>>, vector<4x256xf32>
    tpu.vector_store %arg8[%c24, %c0_31], %60 {strides = array<i32>} : memref<36x256xf32, #tpu.memory_space<vmem>>, vector<4x256xf32>,
    %c0_32 = arith.constant 0 : index
    %c144 = arith.constant 144 : index
    %62 = vector.load %arg7[%c0_32, %c144] : memref<4x401xf32, #tpu.memory_space<vmem>>, vector<4x256xf32>
    %c28 = arith.constant 28 : index
    %c0_33 = arith.constant 0 : index
    %63 = vector.load %arg8[%c28, %c0_33] : memref<36x256xf32, #tpu.memory_space<vmem>>, vector<4x256xf32>
    tpu.vector_store %arg8[%c28, %c0_33], %62 {strides = array<i32>} : memref<36x256xf32, #tpu.memory_space<vmem>>, vector<4x256xf32>,
    %c0_34 = arith.constant 0 : index
    %c145 = arith.constant 145 : index
    %64 = vector.load %arg7[%c0_34, %c145] : memref<4x401xf32, #tpu.memory_space<vmem>>, vector<4x256xf32>
    %cst_35 = arith.constant 0.000000e+00 : f32
    %65 = vector.shape_cast %20 : vector<1x256xi1> to vector<1x256xi1>
    %66 = vector.broadcast %65 : vector<1x256xi1> to vector<4x256xi1>
    %67 = vector.broadcast %cst_35 : f32 to vector<4x256xf32>
    %68 = arith.select %66, %64, %67 : vector<4x256xi1>, vector<4x256xf32>
    %c32 = arith.constant 32 : index
    %c0_36 = arith.constant 0 : index
    %69 = vector.load %arg8[%c32, %c0_36] : memref<36x256xf32, #tpu.memory_space<vmem>>, vector<4x256xf32>
    tpu.vector_store %arg8[%c32, %c0_36], %68 {strides = array<i32>} : memref<36x256xf32, #tpu.memory_space<vmem>>, vector<4x256xf32>,
    %c0_37 = arith.constant 0 : index
    %c0_38 = arith.constant 0 : index
    %70 = vector.load %arg2[%c0_37, %c0_38] : memref<8x36xf32, #tpu.memory_space<vmem>>, vector<8x36xf32>
    %c0_39 = arith.constant 0 : index
    %c0_40 = arith.constant 0 : index
    %71 = vector.load %arg8[%c0_39, %c0_40] : memref<36x256xf32, #tpu.memory_space<vmem>>, vector<36x256xf32>
    %cst_41 = arith.constant dense<0.000000e+00> : vector<8x256xf32>
    %72 = tpu.matmul %70, %71, %cst_41 {dimension_numbers = #tpu.dot_dimension_numbers<[1], [0], [0], [1], [0, 0, 1, 1], [], []>} : vector<8x36xf32>, vector<36x256xf32>, vector<8x256xf32> -> vector<8x256xf32>
    %c0_42 = arith.constant 0 : index
    %c0_43 = arith.constant 0 : index
    %73 = vector.load %arg3[%c0_42, %c0_43] : memref<8x1xf32, #tpu.memory_space<vmem>>, vector<8x1xf32>
    %74 = vector.broadcast %73 : vector<8x1xf32> to vector<8x256xf32>
    %75 = arith.addf %72, %74 : vector<8x256xf32>
    %cst_44 = arith.constant 0.000000e+00 : f32
    %76 = vector.broadcast %cst_44 : f32 to vector<8x256xf32>
    %77 = arith.maximumf %75, %76 : vector<8x256xf32>
    %cst_45 = arith.constant 0.000000e+00 : f32
    %78 = vector.broadcast %cst_45 : f32 to vector<8x128xf32>
    %c0_46 = arith.constant 0 : index
    %c0_47 = arith.constant 0 : index
    %79 = vector.load %arg9[%c0_46, %c0_47] : memref<8x401xf32, #tpu.memory_space<vmem>>, vector<8x128xf32>
    tpu.vector_store %arg9[%c0_46, %c0_47], %78 {strides = array<i32>} : memref<8x401xf32, #tpu.memory_space<vmem>>, vector<8x128xf32>,
    %cst_48 = arith.constant 0.000000e+00 : f32
    %80 = vector.broadcast %cst_48 : f32 to vector<8x17xf32>
    %c0_49 = arith.constant 0 : index
    %c384_50 = arith.constant 384 : index
    %81 = vector.load %arg9[%c0_49, %c384_50] : memref<8x401xf32, #tpu.memory_space<vmem>>, vector<8x17xf32>
    tpu.vector_store %arg9[%c0_49, %c384_50], %80 {strides = array<i32>} : memref<8x401xf32, #tpu.memory_space<vmem>>, vector<8x17xf32>,
    %c0_51 = arith.constant 0 : index
    %c128_52 = arith.constant 128 : index
    %82 = vector.load %arg9[%c0_51, %c128_52] : memref<8x401xf32, #tpu.memory_space<vmem>>, vector<8x256xf32>
    tpu.vector_store %arg9[%c0_51, %c128_52], %77 {strides = array<i32>} : memref<8x401xf32, #tpu.memory_space<vmem>>, vector<8x256xf32>,
    %c0_53 = arith.constant 0 : index
    %c111_54 = arith.constant 111 : index
    %83 = vector.load %arg9[%c0_53, %c111_54] : memref<8x401xf32, #tpu.memory_space<vmem>>, vector<8x256xf32>
    %cst_55 = arith.constant 0.000000e+00 : f32
    %84 = vector.shape_cast %18 : vector<1x256xi1> to vector<1x256xi1>
    %85 = vector.broadcast %84 : vector<1x256xi1> to vector<8x256xi1>
    %86 = vector.broadcast %cst_55 : f32 to vector<8x256xf32>
    %87 = arith.select %85, %83, %86 : vector<8x256xi1>, vector<8x256xf32>
    %c0_56 = arith.constant 0 : index
    %c0_57 = arith.constant 0 : index
    %88 = vector.load %arg10[%c0_56, %c0_57] : memref<72x256xf32, #tpu.memory_space<vmem>>, vector<8x256xf32>
    tpu.vector_store %arg10[%c0_56, %c0_57], %87 {strides = array<i32>} : memref<72x256xf32, #tpu.memory_space<vmem>>, vector<8x256xf32>,
    %c0_58 = arith.constant 0 : index
    %c112_59 = arith.constant 112 : index
    %89 = vector.load %arg9[%c0_58, %c112_59] : memref<8x401xf32, #tpu.memory_space<vmem>>, vector<8x256xf32>
    %c8_60 = arith.constant 8 : index
    %c0_61 = arith.constant 0 : index
    %90 = vector.load %arg10[%c8_60, %c0_61] : memref<72x256xf32, #tpu.memory_space<vmem>>, vector<8x256xf32>
    tpu.vector_store %arg10[%c8_60, %c0_61], %89 {strides = array<i32>} : memref<72x256xf32, #tpu.memory_space<vmem>>, vector<8x256xf32>,
    %c0_62 = arith.constant 0 : index
    %c113_63 = arith.constant 113 : index
    %91 = vector.load %arg9[%c0_62, %c113_63] : memref<8x401xf32, #tpu.memory_space<vmem>>, vector<8x256xf32>
    %cst_64 = arith.constant 0.000000e+00 : f32
    %92 = vector.shape_cast %20 : vector<1x256xi1> to vector<1x256xi1>
    %93 = vector.broadcast %92 : vector<1x256xi1> to vector<8x256xi1>
    %94 = vector.broadcast %cst_64 : f32 to vector<8x256xf32>
    %95 = arith.select %93, %91, %94 : vector<8x256xi1>, vector<8x256xf32>
    %c16_65 = arith.constant 16 : index
    %c0_66 = arith.constant 0 : index
    %96 = vector.load %arg10[%c16_65, %c0_66] : memref<72x256xf32, #tpu.memory_space<vmem>>, vector<8x256xf32>
    tpu.vector_store %arg10[%c16_65, %c0_66], %95 {strides = array<i32>} : memref<72x256xf32, #tpu.memory_space<vmem>>, vector<8x256xf32>,
    %c0_67 = arith.constant 0 : index
    %c127_68 = arith.constant 127 : index
    %97 = vector.load %arg9[%c0_67, %c127_68] : memref<8x401xf32, #tpu.memory_space<vmem>>, vector<8x256xf32>
    %cst_69 = arith.constant 0.000000e+00 : f32
    %98 = vector.shape_cast %18 : vector<1x256xi1> to vector<1x256xi1>
    %99 = vector.broadcast %98 : vector<1x256xi1> to vector<8x256xi1>
    %100 = vector.broadcast %cst_69 : f32 to vector<8x256xf32>
    %101 = arith.select %99, %97, %100 : vector<8x256xi1>, vector<8x256xf32>
    %c24_70 = arith.constant 24 : index
    %c0_71 = arith.constant 0 : index
    %102 = vector.load %arg10[%c24_70, %c0_71] : memref<72x256xf32, #tpu.memory_space<vmem>>, vector<8x256xf32>
    tpu.vector_store %arg10[%c24_70, %c0_71], %101 {strides = array<i32>} : memref<72x256xf32, #tpu.memory_space<vmem>>, vector<8x256xf32>,
    %c0_72 = arith.constant 0 : index
    %c128_73 = arith.constant 128 : index
    %103 = vector.load %arg9[%c0_72, %c128_73] : memref<8x401xf32, #tpu.memory_space<vmem>>, vector<8x256xf32>
    %c32_74 = arith.constant 32 : index
    %c0_75 = arith.constant 0 : index
    %104 = vector.load %arg10[%c32_74, %c0_75] : memref<72x256xf32, #tpu.memory_space<vmem>>, vector<8x256xf32>
    tpu.vector_store %arg10[%c32_74, %c0_75], %103 {strides = array<i32>} : memref<72x256xf32, #tpu.memory_space<vmem>>, vector<8x256xf32>,
    %c0_76 = arith.constant 0 : index
    %c129_77 = arith.constant 129 : index
    %105 = vector.load %arg9[%c0_76, %c129_77] : memref<8x401xf32, #tpu.memory_space<vmem>>, vector<8x256xf32>
    %cst_78 = arith.constant 0.000000e+00 : f32
    %106 = vector.shape_cast %20 : vector<1x256xi1> to vector<1x256xi1>
    %107 = vector.broadcast %106 : vector<1x256xi1> to vector<8x256xi1>
    %108 = vector.broadcast %cst_78 : f32 to vector<8x256xf32>
    %109 = arith.select %107, %105, %108 : vector<8x256xi1>, vector<8x256xf32>
    %c40 = arith.constant 40 : index
    %c0_79 = arith.constant 0 : index
    %110 = vector.load %arg10[%c40, %c0_79] : memref<72x256xf32, #tpu.memory_space<vmem>>, vector<8x256xf32>
    tpu.vector_store %arg10[%c40, %c0_79], %109 {strides = array<i32>} : memref<72x256xf32, #tpu.memory_space<vmem>>, vector<8x256xf32>,
    %c0_80 = arith.constant 0 : index
    %c143_81 = arith.constant 143 : index
    %111 = vector.load %arg9[%c0_80, %c143_81] : memref<8x401xf32, #tpu.memory_space<vmem>>, vector<8x256xf32>
    %cst_82 = arith.constant 0.000000e+00 : f32
    %112 = vector.shape_cast %18 : vector<1x256xi1> to vector<1x256xi1>
    %113 = vector.broadcast %112 : vector<1x256xi1> to vector<8x256xi1>
    %114 = vector.broadcast %cst_82 : f32 to vector<8x256xf32>
    %115 = arith.select %113, %111, %114 : vector<8x256xi1>, vector<8x256xf32>
    %c48 = arith.constant 48 : index
    %c0_83 = arith.constant 0 : index
    %116 = vector.load %arg10[%c48, %c0_83] : memref<72x256xf32, #tpu.memory_space<vmem>>, vector<8x256xf32>
    tpu.vector_store %arg10[%c48, %c0_83], %115 {strides = array<i32>} : memref<72x256xf32, #tpu.memory_space<vmem>>, vector<8x256xf32>,
    %c0_84 = arith.constant 0 : index
    %c144_85 = arith.constant 144 : index
    %117 = vector.load %arg9[%c0_84, %c144_85] : memref<8x401xf32, #tpu.memory_space<vmem>>, vector<8x256xf32>
    %c56 = arith.constant 56 : index
    %c0_86 = arith.constant 0 : index
    %118 = vector.load %arg10[%c56, %c0_86] : memref<72x256xf32, #tpu.memory_space<vmem>>, vector<8x256xf32>
    tpu.vector_store %arg10[%c56, %c0_86], %117 {strides = array<i32>} : memref<72x256xf32, #tpu.memory_space<vmem>>, vector<8x256xf32>,
    %c0_87 = arith.constant 0 : index
    %c145_88 = arith.constant 145 : index
    %119 = vector.load %arg9[%c0_87, %c145_88] : memref<8x401xf32, #tpu.memory_space<vmem>>, vector<8x256xf32>
    %cst_89 = arith.constant 0.000000e+00 : f32
    %120 = vector.shape_cast %20 : vector<1x256xi1> to vector<1x256xi1>
    %121 = vector.broadcast %120 : vector<1x256xi1> to vector<8x256xi1>
    %122 = vector.broadcast %cst_89 : f32 to vector<8x256xf32>
    %123 = arith.select %121, %119, %122 : vector<8x256xi1>, vector<8x256xf32>
    %c64 = arith.constant 64 : index
    %c0_90 = arith.constant 0 : index
    %124 = vector.load %arg10[%c64, %c0_90] : memref<72x256xf32, #tpu.memory_space<vmem>>, vector<8x256xf32>
    tpu.vector_store %arg10[%c64, %c0_90], %123 {strides = array<i32>} : memref<72x256xf32, #tpu.memory_space<vmem>>, vector<8x256xf32>,
    %c0_91 = arith.constant 0 : index
    %c0_92 = arith.constant 0 : index
    %125 = vector.load %arg4[%c0_91, %c0_92] : memref<8x72xf32, #tpu.memory_space<vmem>>, vector<8x72xf32>
    %c0_93 = arith.constant 0 : index
    %c0_94 = arith.constant 0 : index
    %126 = vector.load %arg10[%c0_93, %c0_94] : memref<72x256xf32, #tpu.memory_space<vmem>>, vector<72x256xf32>
    %cst_95 = arith.constant dense<0.000000e+00> : vector<8x256xf32>
    %127 = tpu.matmul %125, %126, %cst_95 {dimension_numbers = #tpu.dot_dimension_numbers<[1], [0], [0], [1], [0, 0, 1, 1], [], []>} : vector<8x72xf32>, vector<72x256xf32>, vector<8x256xf32> -> vector<8x256xf32>
    %c0_96 = arith.constant 0 : index
    %c0_97 = arith.constant 0 : index
    %128 = vector.load %arg5[%c0_96, %c0_97] : memref<8x1xf32, #tpu.memory_space<vmem>>, vector<8x1xf32>
    %129 = vector.broadcast %128 : vector<8x1xf32> to vector<8x256xf32>
    %130 = arith.addf %127, %129 : vector<8x256xf32>
    %cst_98 = arith.constant 0.000000e+00 : f32
    %131 = vector.broadcast %cst_98 : f32 to vector<8x256xf32>
    %132 = arith.maximumf %130, %131 : vector<8x256xf32>
    %c0_99 = arith.constant 0 : index
    %c0_100 = arith.constant 0 : index
    %c0_101 = arith.constant 0 : index
    %133 = vector.load %arg6[%c0_99, %c0_100, %c0_101] : memref<1x8x256xf32, #tpu.memory_space<vmem>>, vector<1x8x256xf32>
    %134 = vector.shape_cast %133 : vector<1x8x256xf32> to vector<8x256xf32>
    %135 = vector.shape_cast %132 : vector<8x256xf32> to vector<1x8x256xf32>
    tpu.vector_store %arg6[%c0_99, %c0_100, %c0_101], %135 {strides = array<i32>} : memref<1x8x256xf32, #tpu.memory_space<vmem>>, vector<1x8x256xf32>,
    return
  }
  func.func @transform_0(%arg0: i32) -> (i32, i32, i32) {
    %c0_i32 = arith.constant 0 : i32
    %c0_i32_0 = arith.constant 0 : i32
    %c0_i32_1 = arith.constant 0 : i32
    return %arg0, %c0_i32, %c0_i32_0 : i32, i32, i32
  }
  func.func @transform_1(%arg0: i32) -> (i32, i32) {
    %c0_i32 = arith.constant 0 : i32
    %c0_i32_0 = arith.constant 0 : i32
    %c0_i32_1 = arith.constant 0 : i32
    return %c0_i32, %c0_i32_0 : i32, i32
  }
  func.func @transform_2(%arg0: i32) -> (i32, i32) {
    %c0_i32 = arith.constant 0 : i32
    %c0_i32_0 = arith.constant 0 : i32
    %c0_i32_1 = arith.constant 0 : i32
    return %c0_i32, %c0_i32_0 : i32, i32
  }
  func.func @transform_3(%arg0: i32) -> (i32, i32) {
    %c0_i32 = arith.constant 0 : i32
    %c0_i32_0 = arith.constant 0 : i32
    %c0_i32_1 = arith.constant 0 : i32
    return %c0_i32, %c0_i32_0 : i32, i32
  }
  func.func @transform_4(%arg0: i32) -> (i32, i32) {
    %c0_i32 = arith.constant 0 : i32
    %c0_i32_0 = arith.constant 0 : i32
    %c0_i32_1 = arith.constant 0 : i32
    return %c0_i32, %c0_i32_0 : i32, i32
  }
  func.func @transform_5(%arg0: i32) -> (i32, i32, i32) {
    %c0_i32 = arith.constant 0 : i32
    %c0_i32_0 = arith.constant 0 : i32
    %c0_i32_1 = arith.constant 0 : i32
    return %arg0, %c0_i32, %c0_i32_0 : i32, i32, i32
  }
}

</mosaic_0001>

<llo_original>
// kernel: double_conv_forward.1
$region0: #{double_conv_forward.1}
  #allocation0 [shape = 'u32[]', space=smem, size = 0x4, offset = 0x4, fixed_abs, tag = 'smem constant byte address 0x4 - core index']
  #allocation1 [shape = 'u32[144,128]{1,0:T(1,128)}', space=vmem, size = 0x12000, scoped, tag = 'internal scratch']
  #allocation2 [shape = 'f32[4,401]{1,0:T(4,128)}', space=vmem, size = 0x2000, scoped, tag = 'scratch operand']
  #allocation3 [shape = 'f32[36,256]{1,0:T(8,128)}', space=vmem, size = 0xa000, scoped, tag = 'scratch operand']
  #allocation4 [shape = 'f32[8,401]{1,0:T(8,128)}', space=vmem, size = 0x4000, scoped, tag = 'scratch operand']
  #allocation5 [shape = 'f32[72,256]{1,0:T(8,128)}', space=vmem, size = 0x12000, scoped, tag = 'scratch operand']
  %s0 = inlined_call_operand.vmem [shape: f32[2,4,256], index: 0, kind: input, shape index: {}]
  %s1 = inlined_call_operand.vmem [shape: f32[8,36], index: 1, kind: input, shape index: {}]
  %s2 = inlined_call_operand.vmem [shape: f32[8,1], index: 2, kind: input, shape index: {}]
  %s3 = inlined_call_operand.vmem [shape: f32[8,72], index: 3, kind: input, shape index: {}]
  %s4 = inlined_call_operand.vmem [shape: f32[8,1], index: 4, kind: input, shape index: {}]
  %s5 = inlined_call_operand.vmem [shape: f32[2,8,256], index: 5, kind: output, shape index: {}]
  %s6 = sld [smem:[#allocation0]]
  $region53: #{double_conv_forward.1} parent=0
    _
  %s8 = ssub.s32 1, %s6
  %s9 = scalar_select 0, %s8, %s6
  loop: start=0, step=1, limit=4
  $region2: #{double_conv_forward.1} parent=0 // loop_pre_header
    _
  $region3: #{double_conv_forward.1} parent=0 // loop_header
    %s11 = sphi 0, %s15
    %p12 = scmp.ge.s32.totalorder %s11, 4
    %s21 = sphi 0, %s23
    %s24 = sphi 0, %s21
    %s25 = sphi 0, %s24
    %s41 = sphi 0, %s25
    %s45 = sphi 0, %s45
    %s47 = sphi 0, %s45
    %s48 = sphi 0, %s47
    %s62 = sphi 0, %s48
    %s66 = sphi 0, %s66
    %s68 = sphi 0, %s66
    %s69 = sphi 0, %s68
    %s83 = sphi 0, %s69
    %s87 = sphi 0, %s87
    %s89 = sphi 0, %s87
    %s90 = sphi 0, %s89
    %s104 = sphi 0, %s90
    %s108 = sphi 0, %s108
    %s110 = sphi 0, %s108
    %s111 = sphi 0, %s110
    %s125 = sphi 0, %s111
    %s131 = sphi 0, %s133
    %s134 = sphi 0, %s131
    %s135 = sphi 0, %s134
    %s151 = sphi 0, %s135
  $region4: #{double_conv_forward.1} parent=0 // loop_header_branch
    %14 = sbr.rel (%p12) target = $region8
  $region5: #{double_conv_forward.1} parent=0 // loop_body
    %s16 = ssub.s32 %s11, 1
    %s17 = ssub.s32 %s11, 2
    %s18 = sadd.s32 %s11, 1
    %s19 = ssub.s32 %s11, %s18
    %p20 = scmp.eq.s32.totalorder %s19, 0
    %s22 = sadd.s32 %s21, 1
    %s23 = scalar_select %p20, %s21, %s22
    %p26 = pneg %p20
    %p27 = scmp.eq.s32.totalorder %s11, 1
    %p28 = por %p26, %p27
    %p29 = scmp.ne.s32.totalorder %s21, %s24
    %p30 = scmp.eq.s32.totalorder %s11, 0
    %p31 = por %p29, %p30
    %p32 = scmp.ne.s32.totalorder %s21, %s24
    %p33 = scmp.eq.s32.totalorder %s16, 1
    %p34 = por %p32, %p33
    %p35 = scmp.ne.s32.totalorder %s24, %s25
    %p36 = scmp.eq.s32.totalorder %s16, 0
    %p37 = por %p35, %p36
    %p38 = scmp.ne.s32.totalorder %s24, %s25
    %p39 = scmp.eq.s32.totalorder %s17, 1
    %p40 = por %p38, %p39
    %p42 = scmp.ne.s32.totalorder %s25, %s41
    %p43 = scmp.eq.s32.totalorder %s17, 0
    %p44 = por %p42, %p43
    %s46 = sadd.s32 %s45, 1
    %p49 = scmp.eq.s32.totalorder %s11, 1
    %p50 = scmp.ne.s32.totalorder %s45, %s47
    %p51 = scmp.eq.s32.totalorder %s11, 0
    %p52 = por %p50, %p51
    %p53 = scmp.ne.s32.totalorder %s45, %s47
    %p54 = scmp.eq.s32.totalorder %s16, 1
    %p55 = por %p53, %p54
    %p56 = scmp.ne.s32.totalorder %s47, %s48
    %p57 = scmp.eq.s32.totalorder %s16, 0
    %p58 = por %p56, %p57
    %p59 = scmp.ne.s32.totalorder %s47, %s48
    %p60 = scmp.eq.s32.totalorder %s17, 1
    %p61 = por %p59, %p60
    %p63 = scmp.ne.s32.totalorder %s48, %s62
    %p64 = scmp.eq.s32.totalorder %s17, 0
    %p65 = por %p63, %p64
    %s67 = sadd.s32 %s66, 1
    %p70 = scmp.eq.s32.totalorder %s11, 1
    %p71 = scmp.ne.s32.totalorder %s66, %s68
    %p72 = scmp.eq.s32.totalorder %s11, 0
    %p73 = por %p71, %p72
    %p74 = scmp.ne.s32.totalorder %s66, %s68
    %p75 = scmp.eq.s32.totalorder %s16, 1
    %p76 = por %p74, %p75
    %p77 = scmp.ne.s32.totalorder %s68, %s69
    %p78 = scmp.eq.s32.totalorder %s16, 0
    %p79 = por %p77, %p78
    %p80 = scmp.ne.s32.totalorder %s68, %s69
    %p81 = scmp.eq.s32.totalorder %s17, 1
    %p82 = por %p80, %p81
    %p84 = scmp.ne.s32.totalorder %s69, %s83
    %p85 = scmp.eq.s32.totalorder %s17, 0
    %p86 = por %p84, %p85
    %s88 = sadd.s32 %s87, 1
    %p91 = scmp.eq.s32.totalorder %s11, 1
    %p92 = scmp.ne.s32.totalorder %s87, %s89
    %p93 = scmp.eq.s32.totalorder %s11, 0
    %p94 = por %p92, %p93
    %p95 = scmp.ne.s32.totalorder %s87, %s89
    %p96 = scmp.eq.s32.totalorder %s16, 1
    %p97 = por %p95, %p96
    %p98 = scmp.ne.s32.totalorder %s89, %s90
    %p99 = scmp.eq.s32.totalorder %s16, 0
    %p100 = por %p98, %p99
    %p101 = scmp.ne.s32.totalorder %s89, %s90
    %p102 = scmp.eq.s32.totalorder %s17, 1
    %p103 = por %p101, %p102
    %p105 = scmp.ne.s32.totalorder %s90, %s104
    %p106 = scmp.eq.s32.totalorder %s17, 0
    %p107 = por %p105, %p106
    %s109 = sadd.s32 %s108, 1
    %p112 = scmp.eq.s32.totalorder %s11, 1
    %p113 = scmp.ne.s32.totalorder %s108, %s110
    %p114 = scmp.eq.s32.totalorder %s11, 0
    %p115 = por %p113, %p114
    %p116 = scmp.ne.s32.totalorder %s108, %s110
    %p117 = scmp.eq.s32.totalorder %s16, 1
    %p118 = por %p116, %p117
    %p119 = scmp.ne.s32.totalorder %s110, %s111
    %p120 = scmp.eq.s32.totalorder %s16, 0
    %p121 = por %p119, %p120
    %p122 = scmp.ne.s32.totalorder %s110, %s111
    %p123 = scmp.eq.s32.totalorder %s17, 1
    %p124 = por %p122, %p123
    %p126 = scmp.ne.s32.totalorder %s111, %s125
    %p127 = scmp.eq.s32.totalorder %s17, 0
    %p128 = por %p126, %p127
    %s129 = ssub.s32 %s11, %s18
    %p130 = scmp.eq.s32.totalorder %s129, 0
    %s132 = sadd.s32 %s131, 1
    %s133 = scalar_select %p130, %s131, %s132
    %p136 = pneg %p130
    %p137 = scmp.eq.s32.totalorder %s11, 1
    %p138 = por %p136, %p137
    %p139 = scmp.ne.s32.totalorder %s131, %s134
    %p140 = scmp.eq.s32.totalorder %s11, 0
    %p141 = por %p139, %p140
    %p142 = scmp.ne.s32.totalorder %s131, %s134
    %p143 = scmp.eq.s32.totalorder %s16, 1
    %p144 = por %p142, %p143
    %p145 = scmp.ne.s32.totalorder %s134, %s135
    %p146 = scmp.eq.s32.totalorder %s16, 0
    %p147 = por %p145, %p146
    %p148 = scmp.ne.s32.totalorder %s134, %s135
    %p149 = scmp.eq.s32.totalorder %s17, 1
    %p150 = por %p148, %p149
    %p152 = scmp.ne.s32.totalorder %s135, %s151
    %p153 = scmp.eq.s32.totalorder %s17, 0
    %p154 = por %p152, %p153
    %p155 = scmp.le.s32.totalorder 1, %s11
    %p156 = scmp.lt.s32.totalorder %s11, 3
    %p157 = pnand %p155, %p156
    %p158 = pneg %p157
    // Predicated region
    $region9: #{double_conv_forward.1} parent=5 // pred_check
      _
    $region10: #{double_conv_forward.1} parent=5 // pred_check_branch
      %160 = sbr.rel (%p157) target = $region12
    $region11: #{double_conv_forward.1} parent=5 // pred_region
      %s161 = ssub.s32 %s11, 1
      // Predicated region
      $region13: #{double_conv_forward.1} parent=11 // pred_check
        %p162 = pneg %p58
      $region14: #{double_conv_forward.1} parent=11 // pred_check_branch
        %164 = sbr.rel (%p162) target = $region16
      $region15: #{double_conv_forward.1} parent=11 // pred_region
        _
      $region16: #{double_conv_forward.1} parent=11 // pred_fallthru
        _
      // Predicated region
      $region17: #{double_conv_forward.1} parent=11 // pred_check
        %p165 = pneg %p79
      $region18: #{double_conv_forward.1} parent=11 // pred_check_branch
        %167 = sbr.rel (%p165) target = $region20
      $region19: #{double_conv_forward.1} parent=11 // pred_region
        _
      $region20: #{double_conv_forward.1} parent=11 // pred_fallthru
        _
      // Predicated region
      $region21: #{double_conv_forward.1} parent=11 // pred_check
        %p168 = pneg %p100
      $region22: #{double_conv_forward.1} parent=11 // pred_check_branch
        %170 = sbr.rel (%p168) target = $region24
      $region23: #{double_conv_forward.1} parent=11 // pred_region
        _
      $region24: #{double_conv_forward.1} parent=11 // pred_fallthru
        _
      // Predicated region
      $region25: #{double_conv_forward.1} parent=11 // pred_check
        %p171 = pneg %p121
      $region26: #{double_conv_forward.1} parent=11 // pred_check_branch
        %173 = sbr.rel (%p171) target = $region28
      $region27: #{double_conv_forward.1} parent=11 // pred_region
        _
      $region28: #{double_conv_forward.1} parent=11 // pred_fallthru
        _
    $region12: #{double_conv_forward.1} parent=5 // pred_fallthru
      _
    %p174 = scmp.lt.s32.totalorder %s11, 2
    // Predicated region
    $region29: #{double_conv_forward.1} parent=5 // pred_check
      %p175 = pneg %p174
    $region30: #{double_conv_forward.1} parent=5 // pred_check_branch
      %177 = sbr.rel (%p175) target = $region32
    $region31: #{double_conv_forward.1} parent=5 // pred_region
      // Predicated region
      $region33: #{double_conv_forward.1} parent=31 // pred_check
        %p178 = pneg %p31
      $region34: #{double_conv_forward.1} parent=31 // pred_check_branch
        %180 = sbr.rel (%p178) target = $region36
      $region35: #{double_conv_forward.1} parent=31 // pred_region
        %p181 = scmp.lt.s32.totalorder %s11, 1
        %s182 = scalar_select %p181, %s11, 1
        %s183 = smul.addr %s182, 2
        %s184 = smul.addr %s183, 4
        %s185 = scalar_lea.vmem %s0, %s184
      $region36: #{double_conv_forward.1} parent=31 // pred_fallthru
        _
    $region32: #{double_conv_forward.1} parent=5 // pred_fallthru
      _
    %p186 = scmp.le.s32.totalorder 1, %s11
    %p187 = scmp.lt.s32.totalorder %s11, 3
    %p188 = pnand %p186, %p187
    %p189 = pneg %p188
    // Predicated region
    $region37: #{double_conv_forward.1} parent=5 // pred_check
      _
    $region38: #{double_conv_forward.1} parent=5 // pred_check_branch
      %191 = sbr.rel (%p188) target = $region40
    $region39: #{double_conv_forward.1} parent=5 // pred_region
      %s192 = ssub.s32 %s11, 1
      %p193 = scmp.lt.s32.totalorder %s16, 1
      %s194 = scalar_select %p193, %s16, 1
      %s195 = smul.addr %s194, 2
      %s196 = smul.addr %s195, 4
      %s197 = scalar_lea.vmem %s0, %s196
      %p198 = pneg %p37
      %p199 = pneg %p34
      %p200 = pneg %p58
      %p201 = pneg %p55
      %p202 = pneg %p79
      %p203 = pneg %p76
      %p204 = pneg %p100
      %p205 = pneg %p97
      %p206 = pneg %p121
      %p207 = pneg %p118
      %p208 = pneg %p147
      %p209 = pneg %p144
      %p210 = scmp.lt.s32.totalorder %s16, 1
      %s211 = scalar_select %p210, %s16, 1
      %s212 = smul.addr %s211, 2
      %s213 = smul.addr %s212, 8
      %s214 = scalar_lea.vmem %s5, %s213
      %p215 = scmp.lt.s32.totalorder %s16, 1
      %s216 = scalar_select %p215, %s16, 1
      %s217 = smul.addr %s216, 2
      %s218 = smul.addr %s217, 4
      %s219 = scalar_lea.vmem %s0, %s218
      %p220 = scmp.lt.s32.totalorder %s16, 1
      %s221 = scalar_select %p220, %s16, 1
      %s222 = smul.addr %s221, 2
      %s223 = smul.addr %s222, 8
      %s224 = scalar_lea.vmem %s5, %s223
      %v225 = vlaneseq
      %v226 = vand.u32 %v225, 127
      %v227 = vadd.s32 %v226, 128
      %vm228 = vcmp.lt.s32.totalorder %v226, 0
      %v229 = vsub.s32 0, %v226
      %v230 = vsel %vm228, %v229, %v226
      %v231 = vshrl.u32 %v230, 4
      %v232 = vand.u32 %v230, 15
      %v233 = vsub.s32 0, %v232
      %v234 = vsel %vm228, %v233, %v232
      %vm235 = vcmp.lt.s32.totalorder %v227, 0
      %v236 = vsub.s32 0, %v227
      %v237 = vsel %vm235, %v236, %v227
      %v238 = vshrl.u32 %v237, 4
      %v239 = vand.u32 %v237, 15
      %v240 = vsub.s32 0, %v239
      %v241 = vsel %vm235, %v240, %v239
      %vm242 = vcmp.ne.s32.totalorder %v234, 0
      %vm243 = vcmp.ne.s32.totalorder %v241, 0
      %vm244 = vcmp.lt.s32.totalorder %v234, 0
      %vm245 = vcmp.lt.s32.totalorder %v241, 0
      %vm246 = vmand %vm244, %vm242
      %vm247 = vmand %vm245, %vm243
      %v248 = vadd.s32 %v234, 16
      %v249 = vadd.s32 %v241, 16
      %v250 = vsel %vm246, %v248, %v234
      %v251 = vsel %vm247, %v249, %v241
      %vm252 = vcmp.ge.s32.totalorder %v250, 1
      %vm253 = vcmp.ge.s32.totalorder %v251, 1
      %vm254 = vcmp.le.s32.totalorder %v250, 14
      %vm255 = vcmp.le.s32.totalorder %v251, 14
      %v256 = vld [vmem:[%s219] sm:$0xff]
      %257 = vst [vmem:[#allocation2] sm:$0xf] 0.0
      %vm258 = vcmask 134144
      %259 = vst.msk [vmem:[#allocation2 + $0xc] sm:$0xf] %vm258, 0.0
      %260 = vst [vmem:[#allocation2 + $0x4] sm:$0xff] %v256
      %v261 = vld [vmem:[#allocation2] sm:$0xff]
      %v262 = vld [vmem:[#allocation2 + $0x8] sm:$0xf]
      %v263 = vsel %vm252, 1, 0
      %v264 = vsel %vm253, 1, 0
      %vm265 = vcmp.eq.s32.totalorder %v263, 1
      %vm266 = vcmp.eq.s32.totalorder %v264, 1
      %v269 = vcombine.high %v261, %v261
      %270 = vrot.lane.b32.xlu0 %v261, 17
      %v271 = vpop.permute.xlu0 %270
      %272 = vrot.lane.b32.xlu0 %v269, 17
      %v273 = vpop.permute.xlu0 %272
      %274 = vrot.lane.b32.xlu0 %v262, 17
      %v275 = vpop.permute.xlu0 %274
      %vm276 = vcmask 138240
      %v277 = vsel %vm276, %v271, %v273
      %v278 = vsel %vm276, %v273, %v275
      %v281 = vsel %vm265, %v277, 0.0
      %v282 = vsel %vm266, %v278, 0.0
      %283 = vst [vmem:[#allocation3] sm:$0xf] %v281
      %284 = vst [vmem:[#allocation3 + $0x8] sm:$0xf] %v282
      %v285 = vld [vmem:[#allocation2] sm:$0xff]
      %v286 = vld [vmem:[#allocation2 + $0x8] sm:$0xf]
      %v289 = vcombine.low %v285, %v285
      %v290 = vcombine.low %v286, %v286
      %291 = vrot.lane.b32.xlu0 %v289, 16
      %v292 = vpop.permute.xlu0 %291
      %293 = vrot.lane.b32.xlu0 %v285, 16
      %v294 = vpop.permute.xlu0 %293
      %295 = vrot.lane.b32.xlu0 %v290, 16
      %v296 = vpop.permute.xlu0 %295
      %vm297 = vcmask 130048
      %v298 = vsel %vm297, %v292, %v294
      %v299 = vsel %vm297, %v294, %v296
      %302 = vst [vmem:[#allocation3] sm:$0xf0] %v298
      %303 = vst [vmem:[#allocation3 + $0x8] sm:$0xf0] %v299
      %v304 = vld [vmem:[#allocation2] sm:$0xff]
      %v305 = vld [vmem:[#allocation2 + $0x8] sm:$0xf]
      %v306 = vsel %vm254, 1, 0
      %v307 = vsel %vm255, 1, 0
      %vm308 = vcmp.eq.s32.totalorder %v306, 1
      %vm309 = vcmp.eq.s32.totalorder %v307, 1
      %v312 = vcombine.high %v304, %v304
      %313 = vrot.lane.b32.xlu0 %v304, 15
      %v314 = vpop.permute.xlu0 %313
      %315 = vrot.lane.b32.xlu0 %v312, 15
      %v316 = vpop.permute.xlu0 %315
      %317 = vrot.lane.b32.xlu0 %v305, 15
      %v318 = vpop.permute.xlu0 %317
      %vm319 = vcmask 121856
      %v320 = vsel %vm319, %v314, %v316
      %v321 = vsel %vm319, %v316, %v318
      %v324 = vsel %vm308, %v320, 0.0
      %v325 = vsel %vm309, %v321, 0.0
      %326 = vst [vmem:[#allocation3 + $0x10] sm:$0xf] %v324
      %327 = vst [vmem:[#allocation3 + $0x18] sm:$0xf] %v325
      %v328 = vld [vmem:[#allocation2] sm:$0xff]
      %v329 = vld [vmem:[#allocation2 + $0x8] sm:$0xf]
      %v332 = vcombine.high %v328, %v328
      %333 = vrot.lane.b32.xlu0 %v328, 1
      %v334 = vpop.permute.xlu0 %333
      %335 = vrot.lane.b32.xlu0 %v332, 1
      %v336 = vpop.permute.xlu0 %335
      %337 = vrot.lane.b32.xlu0 %v329, 1
      %v338 = vpop.permute.xlu0 %337
      %vm339 = vcmask 7168
      %v340 = vsel %vm339, %v334, %v336
      %v341 = vsel %vm339, %v336, %v338
      %v344 = vsel %vm265, %v340, 0.0
      %v345 = vsel %vm266, %v341, 0.0
      %v348 = vrot.slane %v344, 4
      %v349 = vrot.slane %v345, 4
      %352 = vst [vmem:[#allocation3 + $0x10] sm:$0xf0] %v348
      %353 = vst [vmem:[#allocation3 + $0x18] sm:$0xf0] %v349
      %v354 = vld [vmem:[#allocation2 + $0x4] sm:$0xff]
      %v356 = vcombine.high %v354, %v354
      %358 = vst [vmem:[#allocation3 + $0x20] sm:$0xf] %v354
      %359 = vst [vmem:[#allocation3 + $0x28] sm:$0xf] %v356
      %v360 = vld [vmem:[#allocation2 + $0x4] sm:$0xff]
      %v361 = vld [vmem:[#allocation2 + $0xc] sm:$0xf]
      %v364 = vcombine.high %v360, %v360
      %365 = vrot.lane.b32.xlu0 %v360, 127
      %v366 = vpop.permute.xlu0 %365
      %367 = vrot.lane.b32.xlu0 %v364, 127
      %v368 = vpop.permute.xlu0 %367
      %369 = vrot.lane.b32.xlu0 %v361, 127
      %v370 = vpop.permute.xlu0 %369
      %vm371 = vcmask 1039360
      %v372 = vsel %vm371, %v366, %v368
      %v373 = vsel %vm371, %v368, %v370
      %v376 = vsel %vm308, %v372, 0.0
      %v377 = vsel %vm309, %v373, 0.0
      %v380 = vrot.slane %v376, 4
      %v381 = vrot.slane %v377, 4
      %384 = vst [vmem:[#allocation3 + $0x20] sm:$0xf0] %v380
      %385 = vst [vmem:[#allocation3 + $0x28] sm:$0xf0] %v381
      %v386 = vld [vmem:[#allocation2 + $0x4] sm:$0xff]
      %v387 = vld [vmem:[#allocation2 + $0xc] sm:$0xf]
      %v390 = vcombine.high %v386, %v386
      %391 = vrot.lane.b32.xlu0 %v386, 113
      %v392 = vpop.permute.xlu0 %391
      %393 = vrot.lane.b32.xlu0 %v390, 113
      %v394 = vpop.permute.xlu0 %393
      %395 = vrot.lane.b32.xlu0 %v387, 113
      %v396 = vpop.permute.xlu0 %395
      %vm397 = vcmask 924672
      %v398 = vsel %vm397, %v392, %v394
      %v399 = vsel %vm397, %v394, %v396
      %v402 = vsel %vm265, %v398, 0.0
      %v403 = vsel %vm266, %v399, 0.0
      %404 = vst [vmem:[#allocation3 + $0x30] sm:$0xf] %v402
      %405 = vst [vmem:[#allocation3 + $0x38] sm:$0xf] %v403
      %v406 = vld [vmem:[#allocation2 + $0x4] sm:$0xff]
      %v407 = vld [vmem:[#allocation2 + $0xc] sm:$0xf]
      %v410 = vcombine.low %v406, %v406
      %v411 = vcombine.low %v407, %v407
      %412 = vrot.lane.b32.xlu0 %v410, 112
      %v413 = vpop.permute.xlu0 %412
      %414 = vrot.lane.b32.xlu0 %v406, 112
      %v415 = vpop.permute.xlu0 %414
      %416 = vrot.lane.b32.xlu0 %v411, 112
      %v417 = vpop.permute.xlu0 %416
      %vm418 = vcmask 916480
      %v419 = vsel %vm418, %v413, %v415
      %v420 = vsel %vm418, %v415, %v417
      %423 = vst [vmem:[#allocation3 + $0x30] sm:$0xf0] %v419
      %424 = vst [vmem:[#allocation3 + $0x38] sm:$0xf0] %v420
      %v425 = vld [vmem:[#allocation2 + $0x4] sm:$0xff]
      %v426 = vld [vmem:[#allocation2 + $0xc] sm:$0xf]
      %v429 = vcombine.high %v425, %v425
      %430 = vrot.lane.b32.xlu0 %v425, 111
      %v431 = vpop.permute.xlu0 %430
      %432 = vrot.lane.b32.xlu0 %v429, 111
      %v433 = vpop.permute.xlu0 %432
      %434 = vrot.lane.b32.xlu0 %v426, 111
      %v435 = vpop.permute.xlu0 %434
      %vm436 = vcmask 908288
      %v437 = vsel %vm436, %v431, %v433
      %v438 = vsel %vm436, %v433, %v435
      %v441 = vsel %vm308, %v437, 0.0
      %v442 = vsel %vm309, %v438, 0.0
      %443 = vst [vmem:[#allocation3 + $0x40] sm:$0xf] %v441
      %444 = vst [vmem:[#allocation3 + $0x48] sm:$0xf] %v442
      %v445 = vld [vmem:[%s1] sm:$0xff]
      %v446 = vld [vmem:[#allocation3] sm:$0xff]
      %v447 = vld [vmem:[#allocation3 + $0x8] sm:$0xff]
      %v448 = vld [vmem:[#allocation3 + $0x10] sm:$0xff]
      %v449 = vld [vmem:[#allocation3 + $0x18] sm:$0xff]
      %v450 = vld [vmem:[#allocation3 + $0x20] sm:$0xff]
      %v451 = vld [vmem:[#allocation3 + $0x28] sm:$0xff]
      %v452 = vld [vmem:[#allocation3 + $0x30] sm:$0xff]
      %v453 = vld [vmem:[#allocation3 + $0x38] sm:$0xff]
      %v454 = vld [vmem:[#allocation3 + $0x40] sm:$0xf]
      %v455 = vld [vmem:[#allocation3 + $0x48] sm:$0xf]
      %v456 = vld [vmem:[%s2] sm:$0xff]
      %458 = vset.pattern.permute.xlu0 0
      %459 = vperm.xlu0 %458, %v456
      %v460 = vpop.permute.xlu0 %459
      %vm462 = vcmask 293888
      %v464 = vsel %vm462, %v445, 0
      %vm466 = vcmask 1043456
      %v468 = vsel %vm466, %v454, 0
      %v471 = vsel %vm466, %v455, 0
      %473 = vmatprep.subr.mxu0 %v447
      %474 = vmatpush1.msra.mxu0 %v446
      %475 = vmatprep.subr.mxu0 %v449
      %476 = vmatpush1.msra.mxu0 %v448
      %477 = vmatprep.subr.mxu0 %v451
      %478 = vmatpush1.msra.mxu0 %v450
      %479 = vmatprep.subr.mxu0 %v453
      %480 = vmatpush1.msra.mxu0 %v452
      %481 = vmatprep.subr.mxu0 %v471
      %482 = vmatpush1.msra.mxu0 %v468
      %483 = vmatprep.subr.mxu0 0.0
      %484 = vmatpush1.msra.mxu0 0.0
      %485 = vmatprep.subr.mxu0 0.0
      %486 = vmatpush1.msra.mxu0 0.0
      %487 = vmatprep.subr.mxu0 0.0
      %488 = vmatpush1.msra.mxu0 0.0
      %489 = vmatprep.subr.mxu0 0.0
      %490 = vmatpush1.msra.mxu0 0.0
      %491 = vmatprep.subr.mxu0 0.0
      %492 = vmatpush1.msra.mxu0 0.0
      %493 = vmatprep.subr.mxu0 0.0
      %494 = vmatpush1.msra.mxu0 0.0
      %495 = vmatprep.subr.mxu0 0.0
      %496 = vmatpush1.msra.mxu0 0.0
      %497 = vmatprep.subr.mxu0 0.0
      %498 = vmatpush1.msra.mxu0 0.0
      %499 = vmatprep.subr.mxu0 0.0
      %500 = vmatpush1.msra.mxu0 0.0
      %501 = vmatprep.subr.mxu0 0.0
      %502 = vmatpush1.msra.mxu0 0.0
      %503 = vmatprep.subr.mxu0 0.0
      %504 = vmatpush1.msra.mxu0 0.0
      %505 = vmatprep.subr.mxu0 0.0
      %506 = vmatpush1.msra.mxu0 0.0
      %507 = vmatprep.subr.mxu0 0.0
      %508 = vmatpush1.msra.mxu0 0.0
      %509 = vmatprep.subr.mxu0 0.0
      %510 = vmatpush1.msra.mxu0 0.0
      %511 = vmatprep.subr.mxu0 0.0
      %512 = vmatpush1.msra.mxu0 0.0
      %513 = vmatprep.subr.mxu0 0.0
      %514 = vmatpush1.msra.mxu0 0.0
      %515 = vmatprep.subr.mxu0 0.0
      %516 = vmatpush1.msra.mxu0 0.0
      %517 = vmatprep.subr.mxu0 0.0
      %518 = vmatpush1.msra.mxu0 0.0
      %519 = vmatprep.subr.mxu0 0.0
      %520 = vmatpush1.msra.mxu0 0.0
      %521 = vmatprep.subr.mxu0 0.0
      %522 = vmatpush1.msra.mxu0 0.0
      %523 = vmatprep.subr.mxu0 0.0
      %524 = vmatpush1.msra.mxu0 0.0
      %525 = vmatprep.subr.mxu0 0.0
      %526 = vmatpush1.msra.mxu0 0.0
      %527 = vmatprep.subr.mxu0 0.0
      %528 = vmatpush1.msra.mxu0 0.0
      %529 = vmatprep.subr.mxu0 0.0
      %530 = vmatpush1.msra.mxu0 0.0
      %531 = vmatprep.subr.mxu0 0.0
      %532 = vmatpush1.msra.mxu0 0.0
      %533 = vmatprep.subr.mxu0 0.0
      %534 = vmatpush1.msra.mxu0 0.0
      %535 = vmatprep.subr.mxu0 0.0
      %536 = vmatpush1.msra.mxu0 0.0
      %537 = vmatprep.mubr.f32.mxu0 0.0
      %538 = vmatmul.mubr.f32.gmra.mrb[0].mxu0 %v464
      %v539 = vpop.f32.mrb[0].mxu0
      %v540 = vadd.f32 %v460, %v539
      %v541 = vpop.f32.mrb[0].mxu0
      %v542 = vadd.f32 %v460, %v541
      %543 = vdwg.mxu0
      %v544 = vmax.f32 %v540, 0.0
      %v545 = vmax.f32 %v542, 0.0
      %546 = vst [vmem:[#allocation4] sm:$0xff] 0.0
      %547 = vst.msk [vmem:[#allocation4 + $0x18] sm:$0xff] %vm276, 0.0
      %548 = vst [vmem:[#allocation4 + $0x8] sm:$0xff] %v544
      %549 = vst [vmem:[#allocation4 + $0x10] sm:$0xff] %v545
      %v550 = vld [vmem:[#allocation4] sm:$0xff]
      %v551 = vld [vmem:[#allocation4 + $0x8] sm:$0xff]
      %v552 = vld [vmem:[#allocation4 + $0x10] sm:$0xff]
      %556 = vrot.lane.b32.xlu0 %v550, 17
      %v557 = vpop.permute.xlu0 %556
      %558 = vrot.lane.b32.xlu0 %v551, 17
      %v559 = vpop.permute.xlu0 %558
      %560 = vrot.lane.b32.xlu0 %v552, 17
      %v561 = vpop.permute.xlu0 %560
      %v562 = vsel %vm276, %v557, %v559
      %v563 = vsel %vm276, %v559, %v561
      %v566 = vsel %vm265, %v562, 0.0
      %v567 = vsel %vm266, %v563, 0.0
      %568 = vst [vmem:[#allocation5] sm:$0xff] %v566
      %569 = vst [vmem:[#allocation5 + $0x8] sm:$0xff] %v567
      %v570 = vld [vmem:[#allocation4] sm:$0xff]
      %v571 = vld [vmem:[#allocation4 + $0x8] sm:$0xff]
      %v572 = vld [vmem:[#allocation4 + $0x10] sm:$0xff]
      %576 = vrot.lane.b32.xlu0 %v570, 16
      %v577 = vpop.permute.xlu0 %576
      %578 = vrot.lane.b32.xlu0 %v571, 16
      %v579 = vpop.permute.xlu0 %578
      %580 = vrot.lane.b32.xlu0 %v572, 16
      %v581 = vpop.permute.xlu0 %580
      %v582 = vsel %vm297, %v577, %v579
      %v583 = vsel %vm297, %v579, %v581
      %586 = vst [vmem:[#allocation5 + $0x10] sm:$0xff] %v582
      %587 = vst [vmem:[#allocation5 + $0x18] sm:$0xff] %v583
      %v588 = vld [vmem:[#allocation4] sm:$0xff]
      %v589 = vld [vmem:[#allocation4 + $0x8] sm:$0xff]
      %v590 = vld [vmem:[#allocation4 + $0x10] sm:$0xff]
      %594 = vrot.lane.b32.xlu0 %v588, 15
      %v595 = vpop.permute.xlu0 %594
      %596 = vrot.lane.b32.xlu0 %v589, 15
      %v597 = vpop.permute.xlu0 %596
      %598 = vrot.lane.b32.xlu0 %v590, 15
      %v599 = vpop.permute.xlu0 %598
      %v600 = vsel %vm319, %v595, %v597
      %v601 = vsel %vm319, %v597, %v599
      %v604 = vsel %vm308, %v600, 0.0
      %v605 = vsel %vm309, %v601, 0.0
      %606 = vst [vmem:[#allocation5 + $0x20] sm:$0xff] %v604
      %607 = vst [vmem:[#allocation5 + $0x28] sm:$0xff] %v605
      %v608 = vld [vmem:[#allocation4] sm:$0xff]
      %v609 = vld [vmem:[#allocation4 + $0x8] sm:$0xff]
      %v610 = vld [vmem:[#allocation4 + $0x10] sm:$0xff]
      %614 = vrot.lane.b32.xlu0 %v608, 1
      %v615 = vpop.permute.xlu0 %614
      %616 = vrot.lane.b32.xlu0 %v609, 1
      %v617 = vpop.permute.xlu0 %616
      %618 = vrot.lane.b32.xlu0 %v610, 1
      %v619 = vpop.permute.xlu0 %618
      %v620 = vsel %vm339, %v615, %v617
      %v621 = vsel %vm339, %v617, %v619
      %v624 = vsel %vm265, %v620, 0.0
      %v625 = vsel %vm266, %v621, 0.0
      %626 = vst [vmem:[#allocation5 + $0x30] sm:$0xff] %v624
      %627 = vst [vmem:[#allocation5 + $0x38] sm:$0xff] %v625
      %v628 = vld [vmem:[#allocation4 + $0x8] sm:$0xff]
      %v629 = vld [vmem:[#allocation4 + $0x10] sm:$0xff]
      %630 = vst [vmem:[#allocation5 + $0x40] sm:$0xff] %v628
      %631 = vst [vmem:[#allocation5 + $0x48] sm:$0xff] %v629
      %v632 = vld [vmem:[#allocation4 + $0x8] sm:$0xff]
      %v633 = vld [vmem:[#allocation4 + $0x10] sm:$0xff]
      %v634 = vld [vmem:[#allocation4 + $0x18] sm:$0xff]
      %638 = vrot.lane.b32.xlu0 %v632, 127
      %v639 = vpop.permute.xlu0 %638
      %640 = vrot.lane.b32.xlu0 %v633, 127
      %v641 = vpop.permute.xlu0 %640
      %642 = vrot.lane.b32.xlu0 %v634, 127
      %v643 = vpop.permute.xlu0 %642
      %v644 = vsel %vm371, %v639, %v641
      %v645 = vsel %vm371, %v641, %v643
      %v648 = vsel %vm308, %v644, 0.0
      %v649 = vsel %vm309, %v645, 0.0
      %650 = vst [vmem:[#allocation5 + $0x50] sm:$0xff] %v648
      %651 = vst [vmem:[#allocation5 + $0x58] sm:$0xff] %v649
      %v652 = vld [vmem:[#allocation4 + $0x8] sm:$0xff]
      %v653 = vld [vmem:[#allocation4 + $0x10] sm:$0xff]
      %v654 = vld [vmem:[#allocation4 + $0x18] sm:$0xff]
      %658 = vrot.lane.b32.xlu0 %v652, 113
      %v659 = vpop.permute.xlu0 %658
      %660 = vrot.lane.b32.xlu0 %v653, 113
      %v661 = vpop.permute.xlu0 %660
      %662 = vrot.lane.b32.xlu0 %v654, 113
      %v663 = vpop.permute.xlu0 %662
      %v664 = vsel %vm397, %v659, %v661
      %v665 = vsel %vm397, %v661, %v663
      %v668 = vsel %vm265, %v664, 0.0
      %v669 = vsel %vm266, %v665, 0.0
      %670 = vst [vmem:[#allocation5 + $0x60] sm:$0xff] %v668
      %671 = vst [vmem:[#allocation5 + $0x68] sm:$0xff] %v669
      %v672 = vld [vmem:[#allocation4 + $0x8] sm:$0xff]
      %v673 = vld [vmem:[#allocation4 + $0x10] sm:$0xff]
      %v674 = vld [vmem:[#allocation4 + $0x18] sm:$0xff]
      %678 = vrot.lane.b32.xlu0 %v672, 112
      %v679 = vpop.permute.xlu0 %678
      %680 = vrot.lane.b32.xlu0 %v673, 112
      %v681 = vpop.permute.xlu0 %680
      %682 = vrot.lane.b32.xlu0 %v674, 112
      %v683 = vpop.permute.xlu0 %682
      %v684 = vsel %vm418, %v679, %v681
      %v685 = vsel %vm418, %v681, %v683
      %688 = vst [vmem:[#allocation5 + $0x70] sm:$0xff] %v684
      %689 = vst [vmem:[#allocation5 + $0x78] sm:$0xff] %v685
      %v690 = vld [vmem:[#allocation4 + $0x8] sm:$0xff]
      %v691 = vld [vmem:[#allocation4 + $0x10] sm:$0xff]
      %v692 = vld [vmem:[#allocation4 + $0x18] sm:$0xff]
      %696 = vrot.lane.b32.xlu0 %v690, 111
      %v697 = vpop.permute.xlu0 %696
      %698 = vrot.lane.b32.xlu0 %v691, 111
      %v699 = vpop.permute.xlu0 %698
      %700 = vrot.lane.b32.xlu0 %v692, 111
      %v701 = vpop.permute.xlu0 %700
      %v702 = vsel %vm436, %v697, %v699
      %v703 = vsel %vm436, %v699, %v701
      %v706 = vsel %vm308, %v702, 0.0
      %v707 = vsel %vm309, %v703, 0.0
      %708 = vst [vmem:[#allocation5 + $0x80] sm:$0xff] %v706
      %709 = vst [vmem:[#allocation5 + $0x88] sm:$0xff] %v707
      %v710 = vld [vmem:[%s3] sm:$0xff]
      %v711 = vld [vmem:[#allocation5] sm:$0xff]
      %v712 = vld [vmem:[#allocation5 + $0x8] sm:$0xff]
      %v713 = vld [vmem:[#allocation5 + $0x10] sm:$0xff]
      %v714 = vld [vmem:[#allocation5 + $0x18] sm:$0xff]
      %v715 = vld [vmem:[#allocation5 + $0x20] sm:$0xff]
      %v716 = vld [vmem:[#allocation5 + $0x28] sm:$0xff]
      %v717 = vld [vmem:[#allocation5 + $0x30] sm:$0xff]
      %v718 = vld [vmem:[#allocation5 + $0x38] sm:$0xff]
      %v719 = vld [vmem:[#allocation5 + $0x40] sm:$0xff]
      %v720 = vld [vmem:[#allocation5 + $0x48] sm:$0xff]
      %v721 = vld [vmem:[#allocation5 + $0x50] sm:$0xff]
      %v722 = vld [vmem:[#allocation5 + $0x58] sm:$0xff]
      %v723 = vld [vmem:[#allocation5 + $0x60] sm:$0xff]
      %v724 = vld [vmem:[#allocation5 + $0x68] sm:$0xff]
      %v725 = vld [vmem:[#allocation5 + $0x70] sm:$0xff]
      %v726 = vld [vmem:[#allocation5 + $0x78] sm:$0xff]
      %v727 = vld [vmem:[#allocation5 + $0x80] sm:$0xff]
      %v728 = vld [vmem:[#allocation5 + $0x88] sm:$0xff]
      %v729 = vld [vmem:[%s4] sm:$0xff]
      %731 = vset.pattern.permute.xlu0 0
      %732 = vperm.xlu0 %731, %v729
      %v733 = vpop.permute.xlu0 %732
      %vm735 = vcmask 588800
      %v737 = vsel %vm735, %v710, 0
      %739 = vmatprep.subr.mxu0 %v712
      %740 = vmatpush1.msra.mxu0 %v711
      %741 = vmatprep.subr.mxu0 %v714
      %742 = vmatpush1.msra.mxu0 %v713
      %743 = vmatprep.subr.mxu0 %v716
      %744 = vmatpush1.msra.mxu0 %v715
      %745 = vmatprep.subr.mxu0 %v718
      %746 = vmatpush1.msra.mxu0 %v717
      %747 = vmatprep.subr.mxu0 %v720
      %748 = vmatpush1.msra.mxu0 %v719
      %749 = vmatprep.subr.mxu0 %v722
      %750 = vmatpush1.msra.mxu0 %v721
      %751 = vmatprep.subr.mxu0 %v724
      %752 = vmatpush1.msra.mxu0 %v723
      %753 = vmatprep.subr.mxu0 %v726
      %754 = vmatpush1.msra.mxu0 %v725
      %755 = vmatprep.subr.mxu0 %v728
      %756 = vmatpush1.msra.mxu0 %v727
      %757 = vmatprep.subr.mxu0 0.0
      %758 = vmatpush1.msra.mxu0 0.0
      %759 = vmatprep.subr.mxu0 0.0
      %760 = vmatpush1.msra.mxu0 0.0
      %761 = vmatprep.subr.mxu0 0.0
      %762 = vmatpush1.msra.mxu0 0.0
      %763 = vmatprep.subr.mxu0 0.0
      %764 = vmatpush1.msra.mxu0 0.0
      %765 = vmatprep.subr.mxu0 0.0
      %766 = vmatpush1.msra.mxu0 0.0
      %767 = vmatprep.subr.mxu0 0.0
      %768 = vmatpush1.msra.mxu0 0.0
      %769 = vmatprep.subr.mxu0 0.0
      %770 = vmatpush1.msra.mxu0 0.0
      %771 = vmatprep.subr.mxu0 0.0
      %772 = vmatpush1.msra.mxu0 0.0
      %773 = vmatprep.subr.mxu0 0.0
      %774 = vmatpush1.msra.mxu0 0.0
      %775 = vmatprep.subr.mxu0 0.0
      %776 = vmatpush1.msra.mxu0 0.0
      %777 = vmatprep.subr.mxu0 0.0
      %778 = vmatpush1.msra.mxu0 0.0
      %779 = vmatprep.subr.mxu0 0.0
      %780 = vmatpush1.msra.mxu0 0.0
      %781 = vmatprep.subr.mxu0 0.0
      %782 = vmatpush1.msra.mxu0 0.0
      %783 = vmatprep.subr.mxu0 0.0
      %784 = vmatpush1.msra.mxu0 0.0
      %785 = vmatprep.subr.mxu0 0.0
      %786 = vmatpush1.msra.mxu0 0.0
      %787 = vmatprep.subr.mxu0 0.0
      %788 = vmatpush1.msra.mxu0 0.0
      %789 = vmatprep.subr.mxu0 0.0
      %790 = vmatpush1.msra.mxu0 0.0
      %791 = vmatprep.subr.mxu0 0.0
      %792 = vmatpush1.msra.mxu0 0.0
      %793 = vmatprep.subr.mxu0 0.0
      %794 = vmatpush1.msra.mxu0 0.0
      %795 = vmatprep.subr.mxu0 0.0
      %796 = vmatpush1.msra.mxu0 0.0
      %797 = vmatprep.subr.mxu0 0.0
      %798 = vmatpush1.msra.mxu0 0.0
      %799 = vmatprep.subr.mxu0 0.0
      %800 = vmatpush1.msra.mxu0 0.0
      %801 = vmatprep.subr.mxu0 0.0
      %802 = vmatpush1.msra.mxu0 0.0
      %803 = vmatprep.mubr.f32.mxu0 0.0
      %804 = vmatmul.mubr.f32.gmra.mrb[0].mxu0 %v737
      %v805 = vpop.f32.mrb[0].mxu0
      %v806 = vadd.f32 %v733, %v805
      %v807 = vpop.f32.mrb[0].mxu0
      %v808 = vadd.f32 %v733, %v807
      %809 = vdwg.mxu0
      %v810 = vmax.f32 %v806, 0.0
      %v811 = vmax.f32 %v808, 0.0
      %812 = vst [vmem:[%s224] sm:$0xff] %v810
      %813 = vst [vmem:[%s224 + $0x8] sm:$0xff] %v811
      %p814 = scmp.lt.s32.totalorder %s16, 1
      %s815 = scalar_select %p814, %s16, 1
      %s816 = smul.addr %s815, 2
      %s817 = smul.addr %s816, 8
      %s818 = scalar_lea.vmem %s5, %s817
      // Predicated region
      $region41: #{double_conv_forward.1} parent=39 // pred_check
        %p819 = pneg %p144
      $region42: #{double_conv_forward.1} parent=39 // pred_check_branch
        %821 = sbr.rel (%p819) target = $region44
      $region43: #{double_conv_forward.1} parent=39 // pred_region
        _
      $region44: #{double_conv_forward.1} parent=39 // pred_fallthru
        _
    $region40: #{double_conv_forward.1} parent=5 // pred_fallthru
      _
    %p822 = scmp.le.s32.totalorder 2, %s11
    // Predicated region
    $region45: #{double_conv_forward.1} parent=5 // pred_check
      %p823 = pneg %p822
    $region46: #{double_conv_forward.1} parent=5 // pred_check_branch
      %825 = sbr.rel (%p823) target = $region48
    $region47: #{double_conv_forward.1} parent=5 // pred_region
      %s826 = ssub.s32 %s11, 2
      // Predicated region
      $region49: #{double_conv_forward.1} parent=47 // pred_check
        %p827 = pneg %p150
      $region50: #{double_conv_forward.1} parent=47 // pred_check_branch
        %829 = sbr.rel (%p827) target = $region52
      $region51: #{double_conv_forward.1} parent=47 // pred_region
        %p830 = scmp.lt.s32.totalorder %s17, 1
        %s831 = scalar_select %p830, %s17, 1
        %s832 = smul.addr %s831, 2
        %s833 = smul.addr %s832, 8
        %s834 = scalar_lea.vmem %s5, %s833
      $region52: #{double_conv_forward.1} parent=47 // pred_fallthru
        _
    $region48: #{double_conv_forward.1} parent=5 // pred_fallthru
      _
  $region6: #{double_conv_forward.1} parent=0 // loop_footer
    %s15 = sadd.s32 1, %s11
  $region7: #{double_conv_forward.1} parent=0 // loop_footer_branch
    %10 = sbr.rel target = $region3
  $region8: #{double_conv_forward.1} parent=0 // loop_exit
    _

</llo_original>
